<compile_context>
chip_gen: v5e
topology: v5e:2x2
jax: 0.10.0
libtpu: 0.0.40
codegen_flags: <defaults>
</compile_context>

<pallas_src>
import functools

import jax
import jax.numpy as jnp
from jax.experimental import pallas as pl
from jax.experimental.pallas import tpu as pltpu


def _round_up(x: int, m: int) -> int:
    return ((x + m - 1) // m) * m


def _pick_block(padded: int, align: int, requested: int) -> int:
    """Largest multiple of `align` that divides `padded` and is <= requested."""
    requested = max(align, min(requested, padded))
    best = align
    for cand in range(align, requested + 1, align):
        if padded % cand == 0:
            best = cand
    return best


def _policy_loss_kernel(logp_ref, old_ref, adv_ref, mask_ref, out_ref,
                        acc_loss, acc_mask, acc_rsum, acc_rmax,
                        *, clip_eps: float, true_b: int, true_s: int, has_pad: bool):
    block_b, block_s = logp_ref.shape
    bi = pl.program_id(0)
    si = pl.program_id(1)

    @pl.when(si == 0)
    def _init():
        acc_loss[...] = jnp.zeros_like(acc_loss)
        acc_mask[...] = jnp.zeros_like(acc_mask)
        acc_rsum[...] = jnp.zeros_like(acc_rsum)
        # Init to 0 is safe only because ratio_ = exp(...) > 0 for every real
        # element (and padded elements are excluded / contribute 0).
        acc_rmax[...] = jnp.zeros_like(acc_rmax)

    logp = logp_ref[...].astype(jnp.float32)
    old = old_ref[...].astype(jnp.float32)
    adv = adv_ref[...].astype(jnp.float32)
    mask = mask_ref[...].astype(jnp.float32)

    # ratio_ = ((log_probs - old_log_probs) * action_mask).exp()
    # (masked tokens deliberately contribute ratio=1 to mean/max, as in the reference)
    ratio_ = jnp.exp((logp - old) * mask)
    ratio = jnp.minimum(ratio_, 10.0)  # lower clamp of 0 is a no-op since exp >= 0
    surr1 = ratio * adv
    surr2 = jnp.clip(ratio, 1.0 - clip_eps, 1.0 + clip_eps) * adv
    # Accumulate +min(surr1, surr2) * mask; the overall negation is applied once
    # per row in the finalize step instead of per element.
    min_surr = jnp.minimum(surr1, surr2) * mask

    if has_pad:
        # Residual (8,128)-alignment padding is zero-filled, so it contributes
        # nothing to loss/mask sums, but exp(0)=1 would pollute the ratio max.
        # The ratio *sum* padding contribution is corrected in the JAX epilogue.
        row_ids = jax.lax.broadcasted_iota(jnp.int32, (block_b, block_s), 0) + bi * block_b
        col_ids = jax.lax.broadcasted_iota(jnp.int32, (block_b, block_s), 1) + si * block_s
        valid = (row_ids < true_b) & (col_ids < true_s)
        ratio_for_max = jnp.where(valid, ratio_, 0.0)  # ratio_ > 0, so 0 is a safe neutral
    else:
        ratio_for_max = ratio_

    # One cross-lane (XLU) reduce per quantity per grid step; accumulate the
    # (block_b, 1) partials (broadcast across 128 lanes) into small f32 scratch.
    def _acc_add(acc_ref, row_vals):
        acc_ref[...] += jnp.broadcast_to(row_vals, (block_b, 128))

    _acc_add(acc_loss, jnp.sum(min_surr, axis=1, keepdims=True))
    _acc_add(acc_mask, jnp.sum(mask, axis=1, keepdims=True))
    _acc_add(acc_rsum, jnp.sum(ratio_, axis=1, keepdims=True))
    acc_rmax[...] = jnp.maximum(
        acc_rmax[...],
        jnp.broadcast_to(jnp.max(ratio_for_max, axis=1, keepdims=True), (block_b, 128)))

    @pl.when(si == pl.num_programs(1) - 1)
    def _finalize():
        # Exact division + negation, once per batch tile (lane-dense output).
        out_ref[0, :, :] = -acc_loss[...] / (acc_mask[...] + 1e-8)
        out_ref[1, :, :] = acc_rsum[...]
        out_ref[2, :, :] = acc_rmax[...]


def policy_loss(log_probs, old_log_probs, advantages, action_mask,
                clip_eps: float = 0.2, skip_threshold: float = 20.0,
                block_b: int = 256, block_s: int = 2048):
    """Returns (loss_scalar, skip_bool, ratio_max_scalar) like PolicyLoss.forward.

    Inputs may be f32 / bf16 / int8 / bool; the kernel casts to f32 internally,
    so narrow call-site dtypes directly cut HBM bytes for this mem-bound kernel.
    """
    assert log_probs.shape == old_log_probs.shape == advantages.shape == action_mask.shape
    B, S = log_probs.shape

    # Pad only to the minimal (8, 128) layout multiples; residual padding is
    # handled in-kernel (ratio max) and in the epilogue (ratio mean).
    B_pad = _round_up(B, 8)
    S_pad = _round_up(S, 128)
    has_pad = (B_pad != B) or (S_pad != S)

    # Tile sizes must divide the padded extents.  Cap the batch tile so the
    # batch grid axis has >= 2 tiles when possible (v7x has 2 TensorCores and
    # the batch axis is marked "parallel").
    req_b = min(block_b, B_pad // 2) if B_pad >= 16 else block_b
    blk_b = _pick_block(B_pad, 8, req_b)
    blk_s = _pick_block(S_pad, 128, block_s)
    nb = B_pad // blk_b
    ns = S_pad // blk_s

    def _pad(x):
        if not has_pad:
            return x
        return jnp.pad(x, ((0, B_pad - B), (0, S_pad - S)))

    inputs = tuple(_pad(x) for x in (log_probs, old_log_probs, advantages, action_mask))

    kernel = functools.partial(_policy_loss_kernel, clip_eps=float(clip_eps),
                               true_b=B, true_s=S, has_pad=has_pad)

    in_spec = pl.BlockSpec((blk_b, blk_s), lambda bi, si: (bi, si))
    out_spec = pl.BlockSpec((3, blk_b, 128), lambda bi, si: (0, bi, 0))

    # Explicit scoped-VMEM budget: 4 inputs x 2 pipeline buffers + 4 small f32
    # row accumulators + double-buffered output + headroom.
    in_bytes = sum(2 * blk_b * blk_s * jnp.dtype(x.dtype).itemsize for x in inputs)
    scratch_bytes = 4 * blk_b * 128 * 4
    out_bytes = 2 * 3 * blk_b * 128 * 4
    vmem_limit = int(in_bytes + scratch_bytes + out_bytes + (2 << 20))

    partials = pl.pallas_call(
        kernel,
        out_shape=jax.ShapeDtypeStruct((3, B_pad, 128), jnp.float32),
        grid_spec=pltpu.PrefetchScalarGridSpec(
            num_scalar_prefetch=0,
            grid=(nb, ns),
            in_specs=[in_spec] * 4,
            out_specs=out_spec,
            scratch_shapes=[pltpu.VMEM((blk_b, 128), jnp.float32)] * 4,
        ),
        compiler_params=pltpu.CompilerParams(
            dimension_semantics=("parallel", "arbitrary"),
            vmem_limit_bytes=vmem_limit,
        ),
    )(*inputs)

    # Tiny JAX epilogue over lane-dense per-row partials.
    row_loss_mean = partials[0, :B, 0]                    # padded rows sliced off
    loss = jnp.sum(row_loss_mean) / B
    # Each zero-padded element contributes exp(0)=1 to the unmasked ratio sum;
    # subtract the statically known padded-element count instead of masking in-kernel.
    pad_count = B_pad * S_pad - B * S
    ratio_mean = (jnp.sum(partials[1, :, 0]) - pad_count) / (B * S)
    ratio_max = jnp.max(partials[2, :, 0])                # padded rows hold 0 (< exp)
    # TODO(synk): PyTorch returns a host Python bool for `skip`; here it stays a traced bool.
    skip = ratio_mean > skip_threshold
    return loss, skip, ratio_max


def _reference(log_probs, old_log_probs, advantages, action_mask,
               clip_eps=0.2, skip_threshold=20.0):
    ratio_ = jnp.exp((log_probs - old_log_probs) * action_mask)
    skip = jnp.mean(ratio_) > skip_threshold
    ratio = jnp.clip(ratio_, 0.0, 10.0)
    surr1 = ratio * advantages
    surr2 = jnp.clip(ratio, 1.0 - clip_eps, 1.0 + clip_eps) * advantages
    loss = -jnp.minimum(surr1, surr2)
    loss = jnp.sum(loss * action_mask, axis=1) / (jnp.sum(action_mask, axis=1) + 1e-8)
    return jnp.mean(loss), skip, jnp.max(ratio_)


def _run_case(key, B, S, **kw):
    k1, k2, k3, k4 = jax.random.split(key, 4)
    log_probs = jax.random.normal(k1, (B, S), dtype=jnp.float32) * 0.1
    old_log_probs = jax.random.normal(k2, (B, S), dtype=jnp.float32) * 0.1
    advantages = jax.random.normal(k3, (B, S), dtype=jnp.float32)
    action_mask = (jax.random.uniform(k4, (B, S)) > 0.3).astype(jnp.float32)

    loss, skip, rmax = policy_loss(log_probs, old_log_probs, advantages, action_mask, **kw)
    jax.block_until_ready((loss, skip, rmax))

    ref_loss, ref_skip, ref_rmax = _reference(log_probs, old_log_probs, advantages, action_mask)
    assert jnp.allclose(loss, ref_loss, atol=1e-5, rtol=1e-5), (loss, ref_loss)
    assert bool(skip) == bool(ref_skip)
    assert jnp.allclose(rmax, ref_rmax, atol=1e-5, rtol=1e-5), (rmax, ref_rmax)


if __name__ == "__main__":
    key = jax.random.PRNGKey(0)
    k_a, k_b, k_c = jax.random.split(key, 3)
    # Primary small case consistent with the module (batch=2, seq=8): single tile + padding path.
    _run_case(k_a, 2, 8)
    # Multi-tile + ragged-padding case: B=20 -> 24, S=300 -> 384, grid = (3, 3).
    _run_case(k_b, 20, 300, block_b=8, block_s=128)
    # No-padding static path with >= 2 batch tiles: B=32, S=512, grid = (2, 1).
    _run_case(k_c, 32, 512)
    print("KERNEL_OK")
</pallas_src>

<mosaic_0001>
module attributes {stable_mosaic.version = 11 : i64} {
  func.func @_policy_loss_kernel(%arg0: i32, %arg1: i32, %arg2: memref<8x128xf32, #tpu.memory_space<vmem>>, %arg3: memref<8x128xf32, #tpu.memory_space<vmem>>, %arg4: memref<8x128xf32, #tpu.memory_space<vmem>>, %arg5: memref<8x128xf32, #tpu.memory_space<vmem>>, %arg6: memref<3x8x128xf32, #tpu.memory_space<vmem>>, %arg7: memref<8x128xf32, #tpu.memory_space<vmem>>, %arg8: memref<8x128xf32, #tpu.memory_space<vmem>>, %arg9: memref<8x128xf32, #tpu.memory_space<vmem>>, %arg10: memref<8x128xf32, #tpu.memory_space<vmem>>) attributes {dimension_semantics = [#tpu.dimension_semantics<parallel>, #tpu.dimension_semantics<arbitrary>], iteration_bounds = array<i64: 1, 1>, scalar_prefetch = 0 : i64, scratch_operands = 4 : i64, tpu.core_type = #tpu.core_type<tc>, window_params = [{transform_indices = @transform_0, window_bounds = array<i64: 8, 128>}, {transform_indices = @transform_1, window_bounds = array<i64: 8, 128>}, {transform_indices = @transform_2, window_bounds = array<i64: 8, 128>}, {transform_indices = @transform_3, window_bounds = array<i64: 8, 128>}, {transform_indices = @transform_4, window_bounds = array<i64: 3, 8, 128>}]} {
    %c0_i32 = arith.constant 0 : i32
    %0 = arith.cmpi eq, %arg1, %c0_i32 : i32
    %1 = arith.extui %0 : i1 to i32
    %c0_i32_0 = arith.constant 0 : i32
    %2 = arith.cmpi ne, %1, %c0_i32_0 : i32
    scf.if %2 {
      %cst_34 = arith.constant 0.000000e+00 : f32
      %66 = vector.broadcast %cst_34 : f32 to vector<8x128xf32>
      %c0_35 = arith.constant 0 : index
      %c0_36 = arith.constant 0 : index
      %67 = vector.load %arg7[%c0_35, %c0_36] : memref<8x128xf32, #tpu.memory_space<vmem>>, vector<8x128xf32>
      tpu.vector_store %arg7[%c0_35, %c0_36], %66 {strides = array<i32>} : memref<8x128xf32, #tpu.memory_space<vmem>>, vector<8x128xf32>,
      %cst_37 = arith.constant 0.000000e+00 : f32
      %68 = vector.broadcast %cst_37 : f32 to vector<8x128xf32>
      %c0_38 = arith.constant 0 : index
      %c0_39 = arith.constant 0 : index
      %69 = vector.load %arg8[%c0_38, %c0_39] : memref<8x128xf32, #tpu.memory_space<vmem>>, vector<8x128xf32>
      tpu.vector_store %arg8[%c0_38, %c0_39], %68 {strides = array<i32>} : memref<8x128xf32, #tpu.memory_space<vmem>>, vector<8x128xf32>,
      %cst_40 = arith.constant 0.000000e+00 : f32
      %70 = vector.broadcast %cst_40 : f32 to vector<8x128xf32>
      %c0_41 = arith.constant 0 : index
      %c0_42 = arith.constant 0 : index
      %71 = vector.load %arg9[%c0_41, %c0_42] : memref<8x128xf32, #tpu.memory_space<vmem>>, vector<8x128xf32>
      tpu.vector_store %arg9[%c0_41, %c0_42], %70 {strides = array<i32>} : memref<8x128xf32, #tpu.memory_space<vmem>>, vector<8x128xf32>,
      %cst_43 = arith.constant 0.000000e+00 : f32
      %72 = vector.broadcast %cst_43 : f32 to vector<8x128xf32>
      %c0_44 = arith.constant 0 : index
      %c0_45 = arith.constant 0 : index
      %73 = vector.load %arg10[%c0_44, %c0_45] : memref<8x128xf32, #tpu.memory_space<vmem>>, vector<8x128xf32>
      tpu.vector_store %arg10[%c0_44, %c0_45], %72 {strides = array<i32>} : memref<8x128xf32, #tpu.memory_space<vmem>>, vector<8x128xf32>,
    } else {
    }
    %c0 = arith.constant 0 : index
    %c0_1 = arith.constant 0 : index
    %3 = vector.load %arg2[%c0, %c0_1] : memref<8x128xf32, #tpu.memory_space<vmem>>, vector<8x128xf32>
    %c0_2 = arith.constant 0 : index
    %c0_3 = arith.constant 0 : index
    %4 = vector.load %arg3[%c0_2, %c0_3] : memref<8x128xf32, #tpu.memory_space<vmem>>, vector<8x128xf32>
    %c0_4 = arith.constant 0 : index
    %c0_5 = arith.constant 0 : index
    %5 = vector.load %arg4[%c0_4, %c0_5] : memref<8x128xf32, #tpu.memory_space<vmem>>, vector<8x128xf32>
    %c0_6 = arith.constant 0 : index
    %c0_7 = arith.constant 0 : index
    %6 = vector.load %arg5[%c0_6, %c0_7] : memref<8x128xf32, #tpu.memory_space<vmem>>, vector<8x128xf32>
    %7 = arith.subf %3, %4 : vector<8x128xf32>
    %8 = arith.mulf %7, %6 : vector<8x128xf32>
    %9 = math.exp %8 : vector<8x128xf32>
    %cst = arith.constant 1.000000e+01 : f32
    %10 = vector.broadcast %cst : f32 to vector<8x128xf32>
    %11 = arith.minimumf %9, %10 : vector<8x128xf32>
    %12 = arith.mulf %11, %5 : vector<8x128xf32>
    %cst_8 = arith.constant 8.000000e-01 : f32
    %cst_9 = arith.constant 1.200000e+00 : f32
    %13 = vector.broadcast %cst_8 : f32 to vector<8x128xf32>
    %14 = arith.maximumf %13, %11 : vector<8x128xf32>
    %15 = vector.broadcast %cst_9 : f32 to vector<8x128xf32>
    %16 = arith.minimumf %15, %14 : vector<8x128xf32>
    %17 = arith.mulf %16, %5 : vector<8x128xf32>
    %18 = arith.minimumf %12, %17 : vector<8x128xf32>
    %19 = arith.mulf %18, %6 : vector<8x128xf32>
    %20 = tpu.iota {dimensions = array<i32: 0>} : vector<8x128xi32>
    %c8_i32 = arith.constant 8 : i32
    %21 = arith.muli %arg0, %c8_i32 : i32
    %22 = vector.broadcast %21 : i32 to vector<8x128xi32>
    %23 = arith.addi %20, %22 : vector<8x128xi32>
    %24 = tpu.iota {dimensions = array<i32: 1>} : vector<8x128xi32>
    %c128_i32 = arith.constant 128 : i32
    %25 = arith.muli %arg1, %c128_i32 : i32
    %26 = vector.broadcast %25 : i32 to vector<8x128xi32>
    %27 = arith.addi %24, %26 : vector<8x128xi32>
    %c2_i32 = arith.constant 2 : i32
    %28 = vector.broadcast %c2_i32 : i32 to vector<8x128xi32>
    %29 = arith.cmpi slt, %23, %28 : vector<8x128xi32>
    %c8_i32_10 = arith.constant 8 : i32
    %30 = vector.broadcast %c8_i32_10 : i32 to vector<8x128xi32>
    %31 = arith.cmpi slt, %27, %30 : vector<8x128xi32>
    %32 = arith.andi %29, %31 : vector<8x128xi1>
    %cst_11 = arith.constant 0.000000e+00 : f32
    %33 = vector.broadcast %cst_11 : f32 to vector<8x128xf32>
    %34 = arith.select %32, %9, %33 : vector<8x128xi1>, vector<8x128xf32>
    %cst_12 = arith.constant dense<0.000000e+00> : vector<8xf32>
    %35 = vector.multi_reduction <add>, %19, %cst_12 [1] : vector<8x128xf32> to vector<8xf32>
    %36 = vector.shape_cast %35 : vector<8xf32> to vector<8x1xf32>
    %c0_13 = arith.constant 0 : index
    %c0_14 = arith.constant 0 : index
    %37 = vector.load %arg7[%c0_13, %c0_14] : memref<8x128xf32, #tpu.memory_space<vmem>>, vector<8x128xf32>
    %38 = vector.shape_cast %36 : vector<8x1xf32> to vector<8x1xf32>
    %39 = vector.broadcast %38 : vector<8x1xf32> to vector<8x128xf32>
    %40 = arith.addf %37, %39 : vector<8x128xf32>
    %c0_15 = arith.constant 0 : index
    %c0_16 = arith.constant 0 : index
    %41 = vector.load %arg7[%c0_15, %c0_16] : memref<8x128xf32, #tpu.memory_space<vmem>>, vector<8x128xf32>
    tpu.vector_store %arg7[%c0_15, %c0_16], %40 {strides = array<i32>} : memref<8x128xf32, #tpu.memory_space<vmem>>, vector<8x128xf32>,
    %cst_17 = arith.constant dense<0.000000e+00> : vector<8xf32>
    %42 = vector.multi_reduction <add>, %6, %cst_17 [1] : vector<8x128xf32> to vector<8xf32>
    %43 = vector.shape_cast %42 : vector<8xf32> to vector<8x1xf32>
    %c0_18 = arith.constant 0 : index
    %c0_19 = arith.constant 0 : index
    %44 = vector.load %arg8[%c0_18, %c0_19] : memref<8x128xf32, #tpu.memory_space<vmem>>, vector<8x128xf32>
    %45 = vector.shape_cast %43 : vector<8x1xf32> to vector<8x1xf32>
    %46 = vector.broadcast %45 : vector<8x1xf32> to vector<8x128xf32>
    %47 = arith.addf %44, %46 : vector<8x128xf32>
    %c0_20 = arith.constant 0 : index
    %c0_21 = arith.constant 0 : index
    %48 = vector.load %arg8[%c0_20, %c0_21] : memref<8x128xf32, #tpu.memory_space<vmem>>, vector<8x128xf32>
    tpu.vector_store %arg8[%c0_20, %c0_21], %47 {strides = array<i32>} : memref<8x128xf32, #tpu.memory_space<vmem>>, vector<8x128xf32>,
    %cst_22 = arith.constant dense<0.000000e+00> : vector<8xf32>
    %49 = vector.multi_reduction <add>, %9, %cst_22 [1] : vector<8x128xf32> to vector<8xf32>
    %50 = vector.shape_cast %49 : vector<8xf32> to vector<8x1xf32>
    %c0_23 = arith.constant 0 : index
    %c0_24 = arith.constant 0 : index
    %51 = vector.load %arg9[%c0_23, %c0_24] : memref<8x128xf32, #tpu.memory_space<vmem>>, vector<8x128xf32>
    %52 = vector.shape_cast %50 : vector<8x1xf32> to vector<8x1xf32>
    %53 = vector.broadcast %52 : vector<8x1xf32> to vector<8x128xf32>
    %54 = arith.addf %51, %53 : vector<8x128xf32>
    %c0_25 = arith.constant 0 : index
    %c0_26 = arith.constant 0 : index
    %55 = vector.load %arg9[%c0_25, %c0_26] : memref<8x128xf32, #tpu.memory_space<vmem>>, vector<8x128xf32>
    tpu.vector_store %arg9[%c0_25, %c0_26], %54 {strides = array<i32>} : memref<8x128xf32, #tpu.memory_space<vmem>>, vector<8x128xf32>,
    %c0_27 = arith.constant 0 : index
    %c0_28 = arith.constant 0 : index
    %56 = vector.load %arg10[%c0_27, %c0_28] : memref<8x128xf32, #tpu.memory_space<vmem>>, vector<8x128xf32>
    %cst_29 = arith.constant dense<0xFF800000> : vector<8xf32>
    %57 = vector.multi_reduction <maximumf>, %34, %cst_29 [1] : vector<8x128xf32> to vector<8xf32>
    %58 = vector.shape_cast %57 : vector<8xf32> to vector<8x1xf32>
    %59 = vector.shape_cast %58 : vector<8x1xf32> to vector<8x1xf32>
    %60 = vector.broadcast %59 : vector<8x1xf32> to vector<8x128xf32>
    %61 = arith.maximumf %56, %60 : vector<8x128xf32>
    %c0_30 = arith.constant 0 : index
    %c0_31 = arith.constant 0 : index
    %62 = vector.load %arg10[%c0_30, %c0_31] : memref<8x128xf32, #tpu.memory_space<vmem>>, vector<8x128xf32>
    tpu.vector_store %arg10[%c0_30, %c0_31], %61 {strides = array<i32>} : memref<8x128xf32, #tpu.memory_space<vmem>>, vector<8x128xf32>,
    %c0_i32_32 = arith.constant 0 : i32
    %63 = arith.cmpi eq, %arg1, %c0_i32_32 : i32
    %64 = arith.extui %63 : i1 to i32
    %c0_i32_33 = arith.constant 0 : i32
    %65 = arith.cmpi ne, %64, %c0_i32_33 : i32
    scf.if %65 {
      %c0_34 = arith.constant 0 : index
      %c0_35 = arith.constant 0 : index
      %66 = vector.load %arg7[%c0_34, %c0_35] : memref<8x128xf32, #tpu.memory_space<vmem>>, vector<8x128xf32>
      %cst_36 = arith.constant 0.000000e+00 : f32
      %67 = vector.broadcast %cst_36 : f32 to vector<8x128xf32>
      %68 = arith.subf %67, %66 : vector<8x128xf32>
      %c0_37 = arith.constant 0 : index
      %c0_38 = arith.constant 0 : index
      %69 = vector.load %arg8[%c0_37, %c0_38] : memref<8x128xf32, #tpu.memory_space<vmem>>, vector<8x128xf32>
      %cst_39 = arith.constant 9.99999993E-9 : f32
      %70 = vector.broadcast %cst_39 : f32 to vector<8x128xf32>
      %71 = arith.addf %69, %70 : vector<8x128xf32>
      %72 = arith.divf %68, %71 : vector<8x128xf32>
      %c0_40 = arith.constant 0 : index
      %c0_41 = arith.constant 0 : index
      %c0_42 = arith.constant 0 : index
      %73 = vector.load %arg6[%c0_40, %c0_41, %c0_42] : memref<3x8x128xf32, #tpu.memory_space<vmem>>, vector<1x8x128xf32>
      %74 = vector.shape_cast %73 : vector<1x8x128xf32> to vector<8x128xf32>
      %75 = vector.shape_cast %72 : vector<8x128xf32> to vector<1x8x128xf32>
      tpu.vector_store %arg6[%c0_40, %c0_41, %c0_42], %75 {strides = array<i32>} : memref<3x8x128xf32, #tpu.memory_space<vmem>>, vector<1x8x128xf32>,
      %c0_43 = arith.constant 0 : index
      %c0_44 = arith.constant 0 : index
      %76 = vector.load %arg9[%c0_43, %c0_44] : memref<8x128xf32, #tpu.memory_space<vmem>>, vector<8x128xf32>
      %c1 = arith.constant 1 : index
      %c0_45 = arith.constant 0 : index
      %c0_46 = arith.constant 0 : index
      %77 = vector.load %arg6[%c1, %c0_45, %c0_46] : memref<3x8x128xf32, #tpu.memory_space<vmem>>, vector<1x8x128xf32>
      %78 = vector.shape_cast %77 : vector<1x8x128xf32> to vector<8x128xf32>
      %79 = vector.shape_cast %76 : vector<8x128xf32> to vector<1x8x128xf32>
      tpu.vector_store %arg6[%c1, %c0_45, %c0_46], %79 {strides = array<i32>} : memref<3x8x128xf32, #tpu.memory_space<vmem>>, vector<1x8x128xf32>,
      %c0_47 = arith.constant 0 : index
      %c0_48 = arith.constant 0 : index
      %80 = vector.load %arg10[%c0_47, %c0_48] : memref<8x128xf32, #tpu.memory_space<vmem>>, vector<8x128xf32>
      %c2 = arith.constant 2 : index
      %c0_49 = arith.constant 0 : index
      %c0_50 = arith.constant 0 : index
      %81 = vector.load %arg6[%c2, %c0_49, %c0_50] : memref<3x8x128xf32, #tpu.memory_space<vmem>>, vector<1x8x128xf32>
      %82 = vector.shape_cast %81 : vector<1x8x128xf32> to vector<8x128xf32>
      %83 = vector.shape_cast %80 : vector<8x128xf32> to vector<1x8x128xf32>
      tpu.vector_store %arg6[%c2, %c0_49, %c0_50], %83 {strides = array<i32>} : memref<3x8x128xf32, #tpu.memory_space<vmem>>, vector<1x8x128xf32>,
    } else {
    }
    return
  }
  func.func @transform_0(%arg0: i32, %arg1: i32) -> (i32, i32) {
    %c0_i32 = arith.constant 0 : i32
    return %arg0, %arg1 : i32, i32
  }
  func.func @transform_1(%arg0: i32, %arg1: i32) -> (i32, i32) {
    %c0_i32 = arith.constant 0 : i32
    return %arg0, %arg1 : i32, i32
  }
  func.func @transform_2(%arg0: i32, %arg1: i32) -> (i32, i32) {
    %c0_i32 = arith.constant 0 : i32
    return %arg0, %arg1 : i32, i32
  }
  func.func @transform_3(%arg0: i32, %arg1: i32) -> (i32, i32) {
    %c0_i32 = arith.constant 0 : i32
    return %arg0, %arg1 : i32, i32
  }
  func.func @transform_4(%arg0: i32, %arg1: i32) -> (i32, i32, i32) {
    %c0_i32 = arith.constant 0 : i32
    %c0_i32_0 = arith.constant 0 : i32
    %c0_i32_1 = arith.constant 0 : i32
    return %c0_i32, %arg0, %c0_i32_0 : i32, i32, i32
  }
}

</mosaic_0001>

<llo_original>
// kernel: tpu_custom_call.1
$region0: #{tpu_custom_call.1}
  #allocation0 [shape = 'u32[]', space=smem, size = 0x4, offset = 0x4, fixed_abs, tag = 'smem constant byte address 0x4 - core index']
  #allocation1 [shape = 'u32[72,128]{1,0:T(1,128)}', space=vmem, size = 0x9000, scoped, tag = 'internal scratch']
  #allocation2 [shape = 'f32[8,128]{1,0:T(8,128)}', space=vmem, size = 0x1000, scoped, tag = 'scratch operand']
  #allocation3 [shape = 'f32[8,128]{1,0:T(8,128)}', space=vmem, size = 0x1000, scoped, tag = 'scratch operand']
  #allocation4 [shape = 'f32[8,128]{1,0:T(8,128)}', space=vmem, size = 0x1000, scoped, tag = 'scratch operand']
  #allocation5 [shape = 'f32[8,128]{1,0:T(8,128)}', space=vmem, size = 0x1000, scoped, tag = 'scratch operand']
  %s0 = inlined_call_operand.hbm [shape: f32[8,128], index: 0, kind: input, shape index: {}]
  %s1 = inlined_call_operand.hbm [shape: f32[8,128], index: 1, kind: input, shape index: {}]
  %s2 = inlined_call_operand.hbm [shape: f32[8,128], index: 2, kind: input, shape index: {}]
  %s3 = inlined_call_operand.hbm [shape: f32[8,128], index: 3, kind: input, shape index: {}]
  %s4 = inlined_call_operand.hbm [shape: f32[3,8,128], index: 4, kind: output, shape index: {}]
  %s5 = sld [smem:[#allocation0]]
  $region50: #{tpu_custom_call.1} parent=0
    _
  %s7 = ssub.s32 1, %s5
  %s8 = scalar_select 0, %s7, %s5
  $region1: #{tpu_custom_call.1} parent=0
    #allocation6 [shape = 'u8[4096]{0}', space=vmem, size = 0x1000, scoped, tag = 'input window, operand 0, single buffered']
    #allocation7 [shape = 's32[1]{0}', space=sflag, size = 0x4, scoped, tag = 'scoped memory for tpu_custom_call.1']
    #allocation8 [shape = 's32[1]{0}', space=sflag, size = 0x4, scoped, tag = 'scoped memory for tpu_custom_call.1']
    #allocation9 [shape = 'u8[4096]{0}', space=vmem, size = 0x1000, scoped, tag = 'input window, operand 1, single buffered']
    #allocation10 [shape = 's32[1]{0}', space=sflag, size = 0x4, scoped, tag = 'scoped memory for tpu_custom_call.1']
    #allocation11 [shape = 'u8[4096]{0}', space=vmem, size = 0x1000, scoped, tag = 'input window, operand 2, single buffered']
    #allocation12 [shape = 'u8[4096]{0}', space=vmem, size = 0x1000, scoped, tag = 'input window, operand 3, single buffered']
    #allocation13 [shape = 's32[1]{0}', space=sflag, size = 0x4, scoped, tag = 'scoped memory for tpu_custom_call.1']
    #allocation14 [shape = 'u8[12288]{0}', space=vmem, size = 0x3000, scoped, tag = 'output window, operand 0, single buffered']
    %9 = vsyncpa [#allocation7], 0
    %10 = vsyncpa [#allocation10], 0
    %11 = vsyncpa [#allocation13], 0
    %12 = vsyncpa [#allocation8], 0
    // Predicated region
    $region2: #{tpu_custom_call.1} parent=1 // pred_check
      _
    $region3: #{tpu_custom_call.1} parent=1 // pred_check_branch
      %14 = sbr.rel (0) target = $region5
    $region4: #{tpu_custom_call.1} parent=1 // pred_region
      %16 = vsyncadd [#allocation7], 0
      %s18 = sshll.u32 %s0, 4
      %s19 = int_to_ptr.hbm [resolvable:$true] %s18
      %s20 = sshll.u32 [#allocation6], 4
      %s21 = int_to_ptr.vmem [resolvable:$true] %s20
      %23 = dma.hbm_to_vmem [thread:$0]  %s19, 128, %s21, [#allocation7]
    $region5: #{tpu_custom_call.1} parent=1 // pred_fallthru
      _
    // Predicated region
    $region6: #{tpu_custom_call.1} parent=1 // pred_check
      _
    $region7: #{tpu_custom_call.1} parent=1 // pred_check_branch
      %25 = sbr.rel (0) target = $region9
    $region8: #{tpu_custom_call.1} parent=1 // pred_region
      %27 = vsyncadd [#allocation10], 0
      %s29 = sshll.u32 %s1, 4
      %s30 = int_to_ptr.hbm [resolvable:$true] %s29
      %s31 = sshll.u32 [#allocation9], 4
      %s32 = int_to_ptr.vmem [resolvable:$true] %s31
      %34 = dma.hbm_to_vmem [thread:$0]  %s30, 128, %s32, [#allocation10]
    $region9: #{tpu_custom_call.1} parent=1 // pred_fallthru
      _
    // Predicated region
    $region10: #{tpu_custom_call.1} parent=1 // pred_check
      _
    $region11: #{tpu_custom_call.1} parent=1 // pred_check_branch
      %36 = sbr.rel (0) target = $region13
    $region12: #{tpu_custom_call.1} parent=1 // pred_region
      %38 = vsyncadd [#allocation10], 0
      %s40 = sshll.u32 %s2, 4
      %s41 = int_to_ptr.hbm [resolvable:$true] %s40
      %s42 = sshll.u32 [#allocation11], 4
      %s43 = int_to_ptr.vmem [resolvable:$true] %s42
      %45 = dma.hbm_to_vmem [thread:$0]  %s41, 128, %s43, [#allocation10]
    $region13: #{tpu_custom_call.1} parent=1 // pred_fallthru
      _
    // Predicated region
    $region14: #{tpu_custom_call.1} parent=1 // pred_check
      _
    $region15: #{tpu_custom_call.1} parent=1 // pred_check_branch
      %47 = sbr.rel (0) target = $region17
    $region16: #{tpu_custom_call.1} parent=1 // pred_region
      %49 = vsyncadd [#allocation13], 0
      %s51 = sshll.u32 %s3, 4
      %s52 = int_to_ptr.hbm [resolvable:$true] %s51
      %s53 = sshll.u32 [#allocation12], 4
      %s54 = int_to_ptr.vmem [resolvable:$true] %s53
      %56 = dma.hbm_to_vmem [thread:$0]  %s52, 128, %s54, [#allocation13]
    $region17: #{tpu_custom_call.1} parent=1 // pred_fallthru
      _
    // Predicated region
    $region18: #{tpu_custom_call.1} parent=1 // pred_check
      _
    $region19: #{tpu_custom_call.1} parent=1 // pred_check_branch
      %58 = sbr.rel (0) target = $region21
    $region20: #{tpu_custom_call.1} parent=1 // pred_region
      %60 = dma.done [#allocation7], 128
    $region21: #{tpu_custom_call.1} parent=1 // pred_fallthru
      _
    // Predicated region
    $region22: #{tpu_custom_call.1} parent=1 // pred_check
      _
    $region23: #{tpu_custom_call.1} parent=1 // pred_check_branch
      %62 = sbr.rel (0) target = $region25
    $region24: #{tpu_custom_call.1} parent=1 // pred_region
      %64 = dma.done [#allocation10], 128
    $region25: #{tpu_custom_call.1} parent=1 // pred_fallthru
      _
    // Predicated region
    $region26: #{tpu_custom_call.1} parent=1 // pred_check
      _
    $region27: #{tpu_custom_call.1} parent=1 // pred_check_branch
      %66 = sbr.rel (0) target = $region29
    $region28: #{tpu_custom_call.1} parent=1 // pred_region
      %68 = dma.done [#allocation10], 128
    $region29: #{tpu_custom_call.1} parent=1 // pred_fallthru
      _
    // Predicated region
    $region30: #{tpu_custom_call.1} parent=1 // pred_check
      _
    $region31: #{tpu_custom_call.1} parent=1 // pred_check_branch
      %70 = sbr.rel (0) target = $region33
    $region32: #{tpu_custom_call.1} parent=1 // pred_region
      %72 = dma.done [#allocation13], 128
    $region33: #{tpu_custom_call.1} parent=1 // pred_fallthru
      _
    %p73 = scmp.eq.s32.totalorder 0, 0
    // Predicated region
    $region34: #{tpu_custom_call.1} parent=1 // pred_check
      %p74 = pneg %p73
    $region35: #{tpu_custom_call.1} parent=1 // pred_check_branch
      %76 = sbr.rel (%p74) target = $region37
    $region36: #{tpu_custom_call.1} parent=1 // pred_region
      %77 = vst [vmem:[#allocation2] sm:$0xff] 0.0
      %78 = vst [vmem:[#allocation3] sm:$0xff] 0.0
      %79 = vst [vmem:[#allocation4] sm:$0xff] 0.0
      %80 = vst [vmem:[#allocation5] sm:$0xff] 0.0
    $region37: #{tpu_custom_call.1} parent=1 // pred_fallthru
      _
    %v81 = vld [vmem:[#allocation6] sm:$0xff]
    %v82 = vld [vmem:[#allocation9] sm:$0xff]
    %v83 = vld [vmem:[#allocation11] sm:$0xff]
    %v84 = vld [vmem:[#allocation12] sm:$0xff]
    %v85 = vsub.f32 %v81, %v82
    %v86 = vmul.f32 %v85, %v84
    %v87 = vmul.f32 %v86, 1.442695
    %v88 = vpow.pop %v87
    %v89 = vmin.f32 %v88, 10.0
    %v90 = vmul.f32 %v89, %v83
    %v91 = vmax.f32 %v89, 0.8
    %v92 = vmin.f32 %v91, 1.2
    %v93 = vmul.f32 %v92, %v83
    %v94 = vmin.f32 %v90, %v93
    %v95 = vmul.f32 %v94, %v84
    %v96 = vlaneseq
    %v97 = vshrl.u32 %v96, 7
    %s98 = smul.u32 0, 8
    %v99 = vstv %s98
    %v100 = vadd.s32 %v97, %v99
    %v101 = vlaneseq
    %v102 = vand.u32 %v101, 127
    %s103 = smul.u32 0, 128
    %v104 = vstv %s103
    %v105 = vadd.s32 %v102, %v104
    %vm106 = vcmp.lt.s32.totalorder %v100, 2
    %vm107 = vcmp.lt.s32.totalorder %v105, 8
    %vm108 = vmand %vm106, %vm107
    %v109 = vsel %vm108, %v88, 0.0
    %110 = vadd.xlane.f32.xlu0 %v95
    %v111 = vpop.xlane.xlu0 %110
    %v112 = vld [vmem:[#allocation2] sm:$0xff]
    %v113 = vadd.f32 %v112, %v111
    %114 = vst [vmem:[#allocation2] sm:$0xff] %v113
    %115 = vadd.xlane.f32.xlu0 %v84
    %v116 = vpop.xlane.xlu0 %115
    %v117 = vld [vmem:[#allocation3] sm:$0xff]
    %v118 = vadd.f32 %v117, %v116
    %119 = vst [vmem:[#allocation3] sm:$0xff] %v118
    %120 = vadd.xlane.f32.xlu0 %v88
    %v121 = vpop.xlane.xlu0 %120
    %v122 = vld [vmem:[#allocation4] sm:$0xff]
    %v123 = vadd.f32 %v122, %v121
    %124 = vst [vmem:[#allocation4] sm:$0xff] %v123
    %v125 = vld [vmem:[#allocation5] sm:$0xff]
    %126 = vmax.xlane.f32.xlu0 %v109
    %v127 = vpop.xlane.xlu0 %126
    %v128 = vmax.f32 %v125, %v127
    %129 = vst [vmem:[#allocation5] sm:$0xff] %v128
    // Predicated region
    $region38: #{tpu_custom_call.1} parent=1 // pred_check
      %p130 = pneg %p73
    $region39: #{tpu_custom_call.1} parent=1 // pred_check_branch
      %132 = sbr.rel (%p130) target = $region41
    $region40: #{tpu_custom_call.1} parent=1 // pred_region
      %v133 = vld [vmem:[#allocation2] sm:$0xff]
      %v134 = vsub.f32 0.0, %v133
      %v135 = vld [vmem:[#allocation3] sm:$0xff]
      %v136 = vadd.f32 %v135, 1e-08
      %v137 = vrcp.pop %v136
      %v138 = vmul.f32 %v136, %v137
      %v139 = vsub.f32 1.0, %v138
      %v140 = vmul.f32 %v137, %v139
      %v141 = vadd.f32 %v137, %v140
      %vm142 = vweird.f32 %v136
      %vm143 = vweird.f32 %v137
      %vm144 = vmor %vm142, %vm143
      %v145 = vsel %vm144, %v137, %v141
      %v146 = vand.u32 2147483647, %v136
      %vm147 = vcmp.eq.f32.partialorder %v146, 8.507059e+37
      %v148 = vand.u32 %v136, 2147483648
      %v149 = vor.u32 1.1754944e-38, %v148
      %v150 = vsel %vm147, %v149, %v145
      %v151 = vmul.f32 %v134, %v150
      %152 = vst [vmem:[#allocation14] sm:$0xff] %v151
      %v153 = vld [vmem:[#allocation4] sm:$0xff]
      %s154 = scalar_lea.vmem [#allocation14], 8
      %155 = vst [vmem:[%s154] sm:$0xff] %v153
      %v156 = vld [vmem:[#allocation5] sm:$0xff]
      %s157 = scalar_lea.vmem [#allocation14], 16
      %158 = vst [vmem:[%s157] sm:$0xff] %v156
    $region41: #{tpu_custom_call.1} parent=1 // pred_fallthru
      _
    // Predicated region
    $region42: #{tpu_custom_call.1} parent=1 // pred_check
      _
    $region43: #{tpu_custom_call.1} parent=1 // pred_check_branch
      %160 = sbr.rel (0) target = $region45
    $region44: #{tpu_custom_call.1} parent=1 // pred_region
      %162 = vsyncadd [#allocation8], 0
      %s163 = sshll.u32 [#allocation14], 4
      %s164 = int_to_ptr.vmem [resolvable:$true] %s163
      %s165 = sshll.u32 %s4, 4
      %s166 = int_to_ptr.hbm [resolvable:$true] %s165
      %171 = dma.vmem_to_hbm [thread:$0]  %s164, 384, %s166, [#allocation8], 128, 128, 8
    $region45: #{tpu_custom_call.1} parent=1 // pred_fallthru
      _
    // Predicated region
    $region46: #{tpu_custom_call.1} parent=1 // pred_check
      _
    $region47: #{tpu_custom_call.1} parent=1 // pred_check_branch
      %173 = sbr.rel (0) target = $region49
    $region48: #{tpu_custom_call.1} parent=1 // pred_region
      %175 = dma.done [#allocation8], 384
    $region49: #{tpu_custom_call.1} parent=1 // pred_fallthru
      _
    %176 = vsyncpa [#allocation7], 1
    %177 = vsyncpa [#allocation10], 1
    %178 = vsyncpa [#allocation13], 1
    %179 = vsyncpa [#allocation8], 1

</llo_original>
